<compile_context>
chip_gen: v5e
topology: v5e:2x2
jax: 0.10.0
libtpu: 0.0.40
codegen_flags: <defaults>
</compile_context>

<pallas_src>
import functools

import jax
import jax.numpy as jnp
from jax.experimental import pallas as pl
from jax.experimental.pallas import tpu as pltpu

BN_EPS = 1e-5


def _round_up(x, m):
    return (x + m - 1) // m * m


def _vmem_capacity_bytes():
    """Physical VMEM of the local chip; conservative v7x default on failure."""
    try:
        return int(pltpu.get_tpu_info().vmem_capacity_bytes)
    except Exception:
        return 64 * 1024 * 1024


def _im2col(x, kh, kw, stride, padding, dilation):
    """x: (N, C, H, W) -> patches (K, N, Ho*Wo), K ordered (c_in, kh, kw)."""
    N, C, H, W = x.shape
    x_p = jnp.pad(x, ((0, 0), (0, 0), (padding, padding), (padding, padding)))
    Ho = (H + 2 * padding - dilation * (kh - 1) - 1) // stride + 1
    Wo = (W + 2 * padding - dilation * (kw - 1) - 1) // stride + 1
    cols = []
    for i in range(kh):
        for j in range(kw):
            patch = x_p[:, :,
                        i * dilation: i * dilation + stride * Ho: stride,
                        j * dilation: j * dilation + stride * Wo: stride]
            cols.append(patch)                       # (N, C, Ho, Wo)
    col = jnp.stack(cols, axis=2)                    # (N, C, kh*kw, Ho, Wo)
    col = col.reshape(N, C * kh * kw, Ho * Wo)       # (N, K, HW)
    return col.transpose(1, 0, 2), Ho, Wo            # (K, N, HW)


def _conv_stats_kernel(w_ref, pt_ref, y_ref, stats_ref, acc_ref):
    # w_ref: (C_pad, tk) bf16   pt_ref: (tk, tm) bf16
    # y_ref: (C_pad, tm) bf16   stats_ref: (C_pad, 2) f32 (sum | sum-of-sq)
    # acc_ref: (C_pad, tm) f32 scratch, resident across the K ("arbitrary") axis.
    k = pl.program_id(1)

    @pl.when(k == 0)
    def _():
        acc_ref[...] = jnp.zeros_like(acc_ref)

    acc_ref[...] += jnp.dot(w_ref[...], pt_ref[...],
                            preferred_element_type=jnp.float32)

    @pl.when(k == pl.num_programs(1) - 1)
    def _():
        y = acc_ref[...]
        y_ref[...] = y.astype(y_ref.dtype)
        s = jnp.sum(y, axis=1, keepdims=True)        # (C_pad, 1)
        ss = jnp.sum(y * y, axis=1, keepdims=True)   # (C_pad, 1)
        stats_ref[...] = jnp.concatenate([s, ss], axis=1)


def _bn_relu_kernel(y_ref, scale_ref, shift_ref, o_ref):
    # y_ref: (C_pad, tm) bf16; scale/shift: (C_pad, 1) f32 (lane-broadcast);
    # o_ref: (C_pad, tm) f32 slab of the NCHW output (leading N dim squeezed).
    y = y_ref[...].astype(jnp.float32)
    o_ref[...] = jnp.maximum(y * scale_ref[...] + shift_ref[...], 0.0)


@functools.partial(jax.jit,
                   static_argnames=("stride", "padding", "dilation", "tm"))
def conv2d_batch_act(x, weight, bias, gamma, beta,
                     stride=1, padding=0, dilation=1, tm=None):
    """x: (N, C_in, H, W) NCHW, weight: (C_out, C_in, kh, kw). Returns NCHW f32."""
    del bias  # exactly cancelled by training-mode BN mean subtraction
    N, C_in, H, W = x.shape
    C_out, _, kh, kw = weight.shape
    K = C_in * kh * kw

    col, Ho, Wo = _im2col(x.astype(jnp.bfloat16), kh, kw,
                          stride, padding, dilation)        # (K, N, HW) bf16
    HW = Ho * Wo
    M = N * HW

    C_pad = _round_up(max(C_out, 8), 8)

    # ---- K (contraction) tiling: untiled when small, 512-wide blocks else ----
    if K <= 2048:
        tk, K_pad = K, K
    else:
        tk = 512
        K_pad = _round_up(K, tk)
    n_k = K_pad // tk

    # ---- VMEM budget + lane-tile (tm) heuristic ------------------------------
    phys_vmem = _vmem_capacity_bytes()
    budget = min(int(phys_vmem * 0.55), 96 * 1024 * 1024)
    vmem_limit = min(int(phys_vmem * 0.75), 112 * 1024 * 1024)
    tm_cap = 512 if phys_vmem <= 64 * 1024 * 1024 else 1024
    if tm is None:
        # per-lane-column bytes:
        #   pass 1: 2x bf16 P^T tile + 2x bf16 Y tile + 1x f32 accumulator
        #   pass 2: 2x bf16 Y in + 2x f32 NCHW out
        per_col = max(4 * tk + 8 * C_pad, 12 * C_pad)
        # resident/double-buffered, tm-independent: bf16 W block, stats,
        # scale/shift.
        fixed = 4 * C_pad * tk + 32 * C_pad
        tm = max(0, budget - fixed) // per_col
        tm = max(128, min(tm_cap, (tm // 128) * 128))
        tm = min(tm, _round_up(HW, 128))
        # TODO(synk): sweep pl.Buffered(3) on the P^T spec for v7x latency hiding.
    else:
        tm = max(128, (tm // 128) * 128)

    # Per-image spatial padding so an M tile never crosses an image boundary;
    # this lets the epilogue write the NCHW layout directly (no XLA transpose).
    HW_pad = _round_up(HW, tm)
    n_hw = HW_pad // tm
    M_pad = N * HW_pad
    n_m = N * n_hw

    pT = jnp.pad(col, ((0, K_pad - K), (0, 0), (0, HW_pad - HW)))
    pT = pT.reshape(K_pad, M_pad)                                  # bf16
    w_flat = weight.reshape(C_out, K).astype(jnp.bfloat16)
    w_pad = jnp.pad(w_flat, ((0, C_pad - C_out), (0, K_pad - K)))  # (C_pad, K_pad)

    # ---- pass 1: conv matmul (lane-dense Y^T, bf16 MXU) + per-tile BN stats ----
    cost1 = pl.CostEstimate(
        flops=2 * M_pad * K_pad * C_pad,
        transcendentals=0,
        bytes_accessed=(2 * K_pad * M_pad + 2 * C_pad * K_pad * n_m
                        + 2 * C_pad * M_pad + 8 * C_pad * n_m))
    y_conv, stats = pl.pallas_call(
        _conv_stats_kernel,
        out_shape=(jax.ShapeDtypeStruct((C_pad, M_pad), jnp.bfloat16),
                   jax.ShapeDtypeStruct((n_m, C_pad, 2), jnp.float32)),
        grid_spec=pltpu.PrefetchScalarGridSpec(
            num_scalar_prefetch=0, grid=(n_m, n_k),
            in_specs=[pl.BlockSpec((C_pad, tk), lambda i, k: (0, k)),
                      pl.BlockSpec((tk, tm), lambda i, k: (k, i))],
            out_specs=[pl.BlockSpec((C_pad, tm), lambda i, k: (0, i)),
                       pl.BlockSpec((None, C_pad, 2), lambda i, k: (i, 0, 0))],
            scratch_shapes=[pltpu.VMEM((C_pad, tm), jnp.float32)]),
        compiler_params=pltpu.CompilerParams(
            dimension_semantics=("parallel", "arbitrary"),
            vmem_limit_bytes=vmem_limit),
        cost_estimate=cost1,
    )(w_pad, pT)

    # ---- fold batch stats + gamma/beta into per-channel scale/shift (f32) ----
    # Padded K rows / spatial columns contribute exactly 0 to both sums, so we
    # divide by the true M.  var = E[y^2] - mean^2 with a max() cancellation
    # guard (biased variance, matching PyTorch BN training normalization).
    sum_c = jnp.sum(stats[:, :, 0], axis=0)        # (C_pad,)
    sumsq_c = jnp.sum(stats[:, :, 1], axis=0)      # (C_pad,)
    mean = sum_c / M
    var = jnp.maximum(sumsq_c / M - mean * mean, 0.0)
    gamma_p = jnp.pad(gamma.astype(jnp.float32), (0, C_pad - C_out))
    beta_p = jnp.pad(beta.astype(jnp.float32), (0, C_pad - C_out))
    scale_c = gamma_p * jax.lax.rsqrt(var + BN_EPS)
    shift_c = beta_p - mean * scale_c
    scale2 = scale_c.reshape(C_pad, 1)
    shift2 = shift_c.reshape(C_pad, 1)

    # ---- pass 2: normalize + ReLU, writing the NCHW layout directly ----------
    cost2 = pl.CostEstimate(
        flops=2 * C_pad * M_pad,
        transcendentals=0,
        bytes_accessed=2 * C_pad * M_pad + 4 * C_pad * M_pad + 8 * C_pad)
    out3 = pl.pallas_call(
        _bn_relu_kernel,
        out_shape=jax.ShapeDtypeStruct((N, C_pad, HW_pad), jnp.float32),
        grid_spec=pltpu.PrefetchScalarGridSpec(
            num_scalar_prefetch=0, grid=(N, n_hw),
            in_specs=[pl.BlockSpec((C_pad, tm), lambda n, j: (0, n * n_hw + j)),
                      pl.BlockSpec((C_pad, 1), lambda n, j: (0, 0)),
                      pl.BlockSpec((C_pad, 1), lambda n, j: (0, 0))],
            out_specs=pl.BlockSpec((None, C_pad, tm), lambda n, j: (n, 0, j))),
        compiler_params=pltpu.CompilerParams(
            dimension_semantics=("parallel", "parallel"),
            vmem_limit_bytes=vmem_limit),
        cost_estimate=cost2,
    )(y_conv, scale2, shift2)

    # (N, C_pad, HW_pad) -> slice padding -> NCHW (pure reshape, no transpose)
    return out3[:, :C_out, :HW].reshape(N, C_out, Ho, Wo)


def _reference(x, weight, bias, gamma, beta, stride, padding, dilation):
    y = jax.lax.conv_general_dilated(
        x, weight, window_strides=(stride, stride),
        padding=[(padding, padding), (padding, padding)],
        rhs_dilation=(dilation, dilation),
        dimension_numbers=("NCHW", "OIHW", "NCHW"))
    y = y + bias.reshape(1, -1, 1, 1)
    mean = jnp.mean(y, axis=(0, 2, 3), keepdims=True)
    var = jnp.mean((y - mean) ** 2, axis=(0, 2, 3), keepdims=True)
    y = (y - mean) * jax.lax.rsqrt(var + BN_EPS)
    y = y * gamma.reshape(1, -1, 1, 1) + beta.reshape(1, -1, 1, 1)
    return jnp.maximum(y, 0.0)


if __name__ == "__main__":
    # Module config: Conv2dBatchAct(in=4, out=8, kernel=3, act_f=ReLU,
    #                               stride=1, padding=1, dilation=1)
    N, C_in, H, W = 2, 4, 16, 16
    C_out, ksz = 8, 3
    stride, padding, dilation = 1, 1, 1

    key = jax.random.PRNGKey(0)
    kx, kw_ = jax.random.split(key)

    x = jax.random.normal(kx, (N, C_in, H, W), dtype=jnp.float32)

    # kaiming_uniform_(nonlinearity='relu'): bound = sqrt(2) * sqrt(3 / fan_in)
    fan_in = C_in * ksz * ksz
    bound = (2.0 ** 0.5) * (3.0 / fan_in) ** 0.5
    weight = jax.random.uniform(kw_, (C_out, C_in, ksz, ksz),
                                minval=-bound, maxval=bound, dtype=jnp.float32)
    bias = jnp.zeros((C_out,), jnp.float32)        # nn.init.constant(bias, 0)
    gamma = jnp.ones((C_out,), jnp.float32)        # BatchNorm2d default affine
    beta = jnp.zeros((C_out,), jnp.float32)

    # tm=128 -> multi-tile M grid at these toy shapes (exercises the tiled /
    # partial-stats / NCHW-epilogue paths); default auto-picks larger tiles.
    out = conv2d_batch_act(x, weight, bias, gamma, beta,
                           stride=stride, padding=padding, dilation=dilation,
                           tm=128)
    out = jax.block_until_ready(out)

    ref = _reference(x, weight, bias, gamma, beta, stride, padding, dilation)
    assert out.shape == (N, C_out, H, W)
    # bf16 matmul inputs + bf16 intermediate storage vs f32 reference.
    err = float(jnp.max(jnp.abs(out - ref)))
    assert jnp.allclose(out, ref, atol=5e-2, rtol=5e-2), err

    print("KERNEL_OK")
</pallas_src>

<mosaic_0001>
module attributes {stable_mosaic.version = 11 : i64} {
  func.func @_conv_stats_kernel(%arg0: i32, %arg1: i32, %arg2: memref<8x36xbf16, #tpu.memory_space<vmem>>, %arg3: memref<36x128xbf16, #tpu.memory_space<vmem>>, %arg4: memref<8x128xbf16, #tpu.memory_space<vmem>>, %arg5: memref<1x8x2xf32, #tpu.memory_space<vmem>>, %arg6: memref<8x128xf32, #tpu.memory_space<vmem>>) attributes {dimension_semantics = [#tpu.dimension_semantics<parallel>, #tpu.dimension_semantics<arbitrary>], iteration_bounds = array<i64: 4, 1>, scalar_prefetch = 0 : i64, scratch_operands = 1 : i64, tpu.core_type = #tpu.core_type<tc>, window_params = [{transform_indices = @transform_0, window_bounds = array<i64: 8, 36>}, {transform_indices = @transform_1, window_bounds = array<i64: 36, 128>}, {transform_indices = @transform_2, window_bounds = array<i64: 8, 128>}, {transform_indices = @transform_3, window_bounds = array<i64: 1, 8, 2>}]} {
    %c0_i32 = arith.constant 0 : i32
    %0 = arith.cmpi eq, %arg1, %c0_i32 : i32
    %1 = arith.extui %0 : i1 to i32
    %c0_i32_0 = arith.constant 0 : i32
    %2 = arith.cmpi ne, %1, %c0_i32_0 : i32
    scf.if %2 {
      %cst_10 = arith.constant 0.000000e+00 : f32
      %12 = vector.broadcast %cst_10 : f32 to vector<8x128xf32>
      %c0_11 = arith.constant 0 : index
      %c0_12 = arith.constant 0 : index
      %13 = vector.load %arg6[%c0_11, %c0_12] : memref<8x128xf32, #tpu.memory_space<vmem>>, vector<8x128xf32>
      tpu.vector_store %arg6[%c0_11, %c0_12], %12 {strides = array<i32>} : memref<8x128xf32, #tpu.memory_space<vmem>>, vector<8x128xf32>,
    } else {
    }
    %c0 = arith.constant 0 : index
    %c0_1 = arith.constant 0 : index
    %3 = vector.load %arg6[%c0, %c0_1] : memref<8x128xf32, #tpu.memory_space<vmem>>, vector<8x128xf32>
    %c0_2 = arith.constant 0 : index
    %c0_3 = arith.constant 0 : index
    %4 = vector.load %arg2[%c0_2, %c0_3] : memref<8x36xbf16, #tpu.memory_space<vmem>>, vector<8x36xbf16>
    %c0_4 = arith.constant 0 : index
    %c0_5 = arith.constant 0 : index
    %5 = vector.load %arg3[%c0_4, %c0_5] : memref<36x128xbf16, #tpu.memory_space<vmem>>, vector<36x128xbf16>
    %cst = arith.constant dense<0.000000e+00> : vector<8x128xf32>
    %6 = tpu.matmul %4, %5, %cst {dimension_numbers = #tpu.dot_dimension_numbers<[1], [0], [0], [1], [0, 0, 1, 1], [], []>} : vector<8x36xbf16>, vector<36x128xbf16>, vector<8x128xf32> -> vector<8x128xf32>
    %7 = arith.addf %3, %6 : vector<8x128xf32>
    %c0_6 = arith.constant 0 : index
    %c0_7 = arith.constant 0 : index
    %8 = vector.load %arg6[%c0_6, %c0_7] : memref<8x128xf32, #tpu.memory_space<vmem>>, vector<8x128xf32>
    tpu.vector_store %arg6[%c0_6, %c0_7], %7 {strides = array<i32>} : memref<8x128xf32, #tpu.memory_space<vmem>>, vector<8x128xf32>,
    %c0_i32_8 = arith.constant 0 : i32
    %9 = arith.cmpi eq, %arg1, %c0_i32_8 : i32
    %10 = arith.extui %9 : i1 to i32
    %c0_i32_9 = arith.constant 0 : i32
    %11 = arith.cmpi ne, %10, %c0_i32_9 : i32
    scf.if %11 {
      %c0_10 = arith.constant 0 : index
      %c0_11 = arith.constant 0 : index
      %12 = vector.load %arg6[%c0_10, %c0_11] : memref<8x128xf32, #tpu.memory_space<vmem>>, vector<8x128xf32>
      %13 = arith.truncf %12 : vector<8x128xf32> to vector<8x128xbf16>
      %c0_12 = arith.constant 0 : index
      %c0_13 = arith.constant 0 : index
      %14 = vector.load %arg4[%c0_12, %c0_13] : memref<8x128xbf16, #tpu.memory_space<vmem>>, vector<8x128xbf16>
      tpu.vector_store %arg4[%c0_12, %c0_13], %13 {strides = array<i32>} : memref<8x128xbf16, #tpu.memory_space<vmem>>, vector<8x128xbf16>,
      %cst_14 = arith.constant dense<0.000000e+00> : vector<8xf32>
      %15 = vector.multi_reduction <add>, %12, %cst_14 [1] : vector<8x128xf32> to vector<8xf32>
      %16 = vector.shape_cast %15 : vector<8xf32> to vector<8x1xf32>
      %17 = arith.mulf %12, %12 : vector<8x128xf32>
      %cst_15 = arith.constant dense<0.000000e+00> : vector<8xf32>
      %18 = vector.multi_reduction <add>, %17, %cst_15 [1] : vector<8x128xf32> to vector<8xf32>
      %19 = vector.shape_cast %18 : vector<8xf32> to vector<8x1xf32>
      %20 = tpu.concatenate %16, %19 in 1 : vector<8x1xf32>, vector<8x1xf32> -> vector<8x2xf32>
      %c0_16 = arith.constant 0 : index
      %c0_17 = arith.constant 0 : index
      %c0_18 = arith.constant 0 : index
      %21 = vector.load %arg5[%c0_16, %c0_17, %c0_18] : memref<1x8x2xf32, #tpu.memory_space<vmem>>, vector<1x8x2xf32>
      %22 = vector.shape_cast %21 : vector<1x8x2xf32> to vector<8x2xf32>
      %23 = vector.shape_cast %20 : vector<8x2xf32> to vector<1x8x2xf32>
      tpu.vector_store %arg5[%c0_16, %c0_17, %c0_18], %23 {strides = array<i32>} : memref<1x8x2xf32, #tpu.memory_space<vmem>>, vector<1x8x2xf32>,
    } else {
    }
    return
  }
  func.func @transform_0(%arg0: i32, %arg1: i32) -> (i32, i32) {
    %c0_i32 = arith.constant 0 : i32
    %c0_i32_0 = arith.constant 0 : i32
    return %c0_i32, %arg1 : i32, i32
  }
  func.func @transform_1(%arg0: i32, %arg1: i32) -> (i32, i32) {
    %c0_i32 = arith.constant 0 : i32
    return %arg1, %arg0 : i32, i32
  }
  func.func @transform_2(%arg0: i32, %arg1: i32) -> (i32, i32) {
    %c0_i32 = arith.constant 0 : i32
    %c0_i32_0 = arith.constant 0 : i32
    return %c0_i32, %arg0 : i32, i32
  }
  func.func @transform_3(%arg0: i32, %arg1: i32) -> (i32, i32, i32) {
    %c0_i32 = arith.constant 0 : i32
    %c0_i32_0 = arith.constant 0 : i32
    %c0_i32_1 = arith.constant 0 : i32
    return %arg0, %c0_i32, %c0_i32_0 : i32, i32, i32
  }
}

module attributes {stable_mosaic.version = 11 : i64} {
  func.func @_bn_relu_kernel(%arg0: i32, %arg1: i32, %arg2: memref<8x128xbf16, #tpu.memory_space<vmem>>, %arg3: memref<8x1xf32, #tpu.memory_space<vmem>>, %arg4: memref<8x1xf32, #tpu.memory_space<vmem>>, %arg5: memref<1x8x128xf32, #tpu.memory_space<vmem>>) attributes {dimension_semantics = [#tpu.dimension_semantics<parallel>, #tpu.dimension_semantics<parallel>], iteration_bounds = array<i64: 2, 2>, scalar_prefetch = 0 : i64, scratch_operands = 0 : i64, tpu.core_type = #tpu.core_type<tc>, window_params = [{transform_indices = @transform_0, window_bounds = array<i64: 8, 128>}, {pipeline_mode = #tpu.pipeline_mode<synchronous>, transform_indices = @transform_1, window_bounds = array<i64: 8, 1>}, {pipeline_mode = #tpu.pipeline_mode<synchronous>, transform_indices = @transform_2, window_bounds = array<i64: 8, 1>}, {transform_indices = @transform_3, window_bounds = array<i64: 1, 8, 128>}]} {
    %c0 = arith.constant 0 : index
    %c0_0 = arith.constant 0 : index
    %0 = vector.load %arg2[%c0, %c0_0] : memref<8x128xbf16, #tpu.memory_space<vmem>>, vector<8x128xbf16>
    %1 = arith.extf %0 : vector<8x128xbf16> to vector<8x128xf32>
    %c0_1 = arith.constant 0 : index
    %c0_2 = arith.constant 0 : index
    %2 = vector.load %arg3[%c0_1, %c0_2] : memref<8x1xf32, #tpu.memory_space<vmem>>, vector<8x1xf32>
    %3 = vector.broadcast %2 : vector<8x1xf32> to vector<8x128xf32>
    %4 = arith.mulf %1, %3 : vector<8x128xf32>
    %c0_3 = arith.constant 0 : index
    %c0_4 = arith.constant 0 : index
    %5 = vector.load %arg4[%c0_3, %c0_4] : memref<8x1xf32, #tpu.memory_space<vmem>>, vector<8x1xf32>
    %6 = vector.broadcast %5 : vector<8x1xf32> to vector<8x128xf32>
    %7 = arith.addf %4, %6 : vector<8x128xf32>
    %cst = arith.constant 0.000000e+00 : f32
    %8 = vector.broadcast %cst : f32 to vector<8x128xf32>
    %9 = arith.maximumf %7, %8 : vector<8x128xf32>
    %c0_5 = arith.constant 0 : index
    %c0_6 = arith.constant 0 : index
    %c0_7 = arith.constant 0 : index
    %10 = vector.load %arg5[%c0_5, %c0_6, %c0_7] : memref<1x8x128xf32, #tpu.memory_space<vmem>>, vector<1x8x128xf32>
    %11 = vector.shape_cast %10 : vector<1x8x128xf32> to vector<8x128xf32>
    %12 = vector.shape_cast %9 : vector<8x128xf32> to vector<1x8x128xf32>
    tpu.vector_store %arg5[%c0_5, %c0_6, %c0_7], %12 {strides = array<i32>} : memref<1x8x128xf32, #tpu.memory_space<vmem>>, vector<1x8x128xf32>,
    return
  }
  func.func @transform_0(%arg0: i32, %arg1: i32) -> (i32, i32) {
    %c2_i32 = arith.constant 2 : i32
    %0 = arith.muli %arg0, %c2_i32 : i32
    %1 = arith.addi %0, %arg1 : i32
    %c0_i32 = arith.constant 0 : i32
    %c0_i32_0 = arith.constant 0 : i32
    return %c0_i32, %1 : i32, i32
  }
  func.func @transform_1(%arg0: i32, %arg1: i32) -> (i32, i32) {
    %c0_i32 = arith.constant 0 : i32
    %c0_i32_0 = arith.constant 0 : i32
    %c0_i32_1 = arith.constant 0 : i32
    return %c0_i32, %c0_i32_0 : i32, i32
  }
  func.func @transform_2(%arg0: i32, %arg1: i32) -> (i32, i32) {
    %c0_i32 = arith.constant 0 : i32
    %c0_i32_0 = arith.constant 0 : i32
    %c0_i32_1 = arith.constant 0 : i32
    return %c0_i32, %c0_i32_0 : i32, i32
  }
  func.func @transform_3(%arg0: i32, %arg1: i32) -> (i32, i32, i32) {
    %c0_i32 = arith.constant 0 : i32
    %c0_i32_0 = arith.constant 0 : i32
    return %arg0, %c0_i32, %arg1 : i32, i32, i32
  }
}

</mosaic_0001>

<llo_original>
// kernel: conv2d_batch_act.2
$region0: #{conv2d_batch_act.2}
  #allocation0 [shape = 'u32[]', space=smem, size = 0x4, offset = 0x4, fixed_abs, tag = 'smem constant byte address 0x4 - core index']
  #allocation1 [shape = 'u32[72,128]{1,0:T(1,128)}', space=vmem, size = 0x9000, scoped, tag = 'internal scratch']
  #allocation2 [shape = 'f32[8,128]{1,0:T(8,128)}', space=vmem, size = 0x1000, scoped, tag = 'scratch operand']
  %s0 = inlined_call_operand.vmem [shape: bf16[8,36], index: 0, kind: input, shape index: {}]
  %s1 = inlined_call_operand.vmem [shape: bf16[36,512], index: 1, kind: input, shape index: {}]
  %s2 = inlined_call_operand.vmem [shape: bf16[8,512], index: 2, kind: output, shape index: {0}]
  %s3 = inlined_call_operand.vmem [shape: f32[4,8,2], index: 3, kind: output, shape index: {1}]
  %4 = xla_tuple %s2, %s3
  %s5 = sld [smem:[#allocation0]]
  $region98: #{conv2d_batch_act.2} parent=0
    _
  %s7 = ssub.s32 1, %s5
  %s8 = scalar_select 0, %s7, %s5
  $region1: #{conv2d_batch_act.2} parent=0
    #allocation3 [shape = 'u8[20480]{0}', space=vmem, size = 0x5000, scoped, tag = 'input window, operand 1']
    loop: start=0, step=1, limit=6
    $region2: #{conv2d_batch_act.2} parent=1 // loop_pre_header
      _
    $region3: #{conv2d_batch_act.2} parent=1 // loop_header
      %s10 = sphi 0, %s14
      %p11 = scmp.ge.s32.totalorder %s10, 6
      %s17 = sphi 0, %s29
      %s18 = sphi 0, %s25
      %s19 = sphi 0, %s17
      %s20 = sphi 0, %s18
      %s21 = sphi 0, %s19
      %s22 = sphi 0, %s20
      %s32 = sphi 0, %s34
      %s35 = sphi 0, %s32
      %s36 = sphi 0, %s35
      %s52 = sphi 0, %s36
      %s60 = sphi 0, %s62
      %s63 = sphi 0, %s60
      %s64 = sphi 0, %s63
      %s80 = sphi 0, %s64
      %s86 = sphi 0, %s88
      %s89 = sphi 0, %s86
      %s90 = sphi 0, %s89
      %s106 = sphi 0, %s90
      %s112 = sphi 0, %s114
      %s115 = sphi 0, %s112
      %s116 = sphi 0, %s115
      %s132 = sphi 0, %s116
    $region4: #{conv2d_batch_act.2} parent=1 // loop_header_branch
      %13 = sbr.rel (%p11) target = $region8
    $region5: #{conv2d_batch_act.2} parent=1 // loop_body
      %s15 = ssub.s32 %s10, 1
      %s16 = ssub.s32 %s10, 2
      %s23 = sadd.s32 1, %s18
      %p24 = scmp.ge.s32.totalorder %s23, 1
      %s25 = scalar_select %p24, 0, %s23
      %s26 = sadd.s32 1, %s17
      %s27 = scalar_select %p24, %s26, %s17
      %p28 = scmp.ge.s32.totalorder %s27, 4
      %s29 = scalar_select %p28, 0, %s27
      %s30 = ssub.s32 %s18, %s25
      %p31 = scmp.eq.s32.totalorder %s30, 0
      %s33 = sadd.s32 %s32, 1
      %s34 = scalar_select %p31, %s32, %s33
      %p37 = pneg %p31
      %p38 = scmp.eq.s32.totalorder %s10, 3
      %p39 = por %p37, %p38
      %p40 = scmp.ne.s32.totalorder %s32, %s35
      %p41 = scmp.eq.s32.totalorder %s10, 0
      %p42 = por %p40, %p41
      %p43 = scmp.ne.s32.totalorder %s32, %s35
      %p44 = scmp.eq.s32.totalorder %s15, 3
      %p45 = por %p43, %p44
      %p46 = scmp.ne.s32.totalorder %s35, %s36
      %p47 = scmp.eq.s32.totalorder %s15, 0
      %p48 = por %p46, %p47
      %p49 = scmp.ne.s32.totalorder %s35, %s36
      %p50 = scmp.eq.s32.totalorder %s16, 3
      %p51 = por %p49, %p50
      %p53 = scmp.ne.s32.totalorder %s36, %s52
      %p54 = scmp.eq.s32.totalorder %s16, 0
      %p55 = por %p53, %p54
      %s56 = ssub.s32 %s18, %s25
      %s57 = ssub.s32 %s17, %s29
      %s58 = sor.u32 %s56, %s57
      %p59 = scmp.eq.s32.totalorder %s58, 0
      %s61 = sadd.s32 %s60, 1
      %s62 = scalar_select %p59, %s60, %s61
      %p65 = pneg %p59
      %p66 = scmp.eq.s32.totalorder %s10, 3
      %p67 = por %p65, %p66
      %p68 = scmp.ne.s32.totalorder %s60, %s63
      %p69 = scmp.eq.s32.totalorder %s10, 0
      %p70 = por %p68, %p69
      %p71 = scmp.ne.s32.totalorder %s60, %s63
      %p72 = scmp.eq.s32.totalorder %s15, 3
      %p73 = por %p71, %p72
      %p74 = scmp.ne.s32.totalorder %s63, %s64
      %p75 = scmp.eq.s32.totalorder %s15, 0
      %p76 = por %p74, %p75
      %p77 = scmp.ne.s32.totalorder %s63, %s64
      %p78 = scmp.eq.s32.totalorder %s16, 3
      %p79 = por %p77, %p78
      %p81 = scmp.ne.s32.totalorder %s64, %s80
      %p82 = scmp.eq.s32.totalorder %s16, 0
      %p83 = por %p81, %p82
      %s84 = ssub.s32 %s17, %s29
      %p85 = scmp.eq.s32.totalorder %s84, 0
      %s87 = sadd.s32 %s86, 1
      %s88 = scalar_select %p85, %s86, %s87
      %p91 = pneg %p85
      %p92 = scmp.eq.s32.totalorder %s10, 3
      %p93 = por %p91, %p92
      %p94 = scmp.ne.s32.totalorder %s86, %s89
      %p95 = scmp.eq.s32.totalorder %s10, 0
      %p96 = por %p94, %p95
      %p97 = scmp.ne.s32.totalorder %s86, %s89
      %p98 = scmp.eq.s32.totalorder %s15, 3
      %p99 = por %p97, %p98
      %p100 = scmp.ne.s32.totalorder %s89, %s90
      %p101 = scmp.eq.s32.totalorder %s15, 0
      %p102 = por %p100, %p101
      %p103 = scmp.ne.s32.totalorder %s89, %s90
      %p104 = scmp.eq.s32.totalorder %s16, 3
      %p105 = por %p103, %p104
      %p107 = scmp.ne.s32.totalorder %s90, %s106
      %p108 = scmp.eq.s32.totalorder %s16, 0
      %p109 = por %p107, %p108
      %s110 = ssub.s32 %s17, %s29
      %p111 = scmp.eq.s32.totalorder %s110, 0
      %s113 = sadd.s32 %s112, 1
      %s114 = scalar_select %p111, %s112, %s113
      %p117 = pneg %p111
      %p118 = scmp.eq.s32.totalorder %s10, 3
      %p119 = por %p117, %p118
      %p120 = scmp.ne.s32.totalorder %s112, %s115
      %p121 = scmp.eq.s32.totalorder %s10, 0
      %p122 = por %p120, %p121
      %p123 = scmp.ne.s32.totalorder %s112, %s115
      %p124 = scmp.eq.s32.totalorder %s15, 3
      %p125 = por %p123, %p124
      %p126 = scmp.ne.s32.totalorder %s115, %s116
      %p127 = scmp.eq.s32.totalorder %s15, 0
      %p128 = por %p126, %p127
      %p129 = scmp.ne.s32.totalorder %s115, %s116
      %p130 = scmp.eq.s32.totalorder %s16, 3
      %p131 = por %p129, %p130
      %p133 = scmp.ne.s32.totalorder %s116, %s132
      %p134 = scmp.eq.s32.totalorder %s16, 0
      %p135 = por %p133, %p134
      %p136 = scmp.le.s32.totalorder 1, %s10
      %p137 = scmp.lt.s32.totalorder %s10, 5
      %p138 = pnand %p136, %p137
      %p139 = pneg %p138
      // Predicated region
      $region9: #{conv2d_batch_act.2} parent=5 // pred_check
        _
      $region10: #{conv2d_batch_act.2} parent=5 // pred_check_branch
        %141 = sbr.rel (%p138) target = $region12
      $region11: #{conv2d_batch_act.2} parent=5 // pred_region
        %s142 = ssub.s32 %s10, 1
        // Predicated region
        $region13: #{conv2d_batch_act.2} parent=11 // pred_check
          %p143 = pneg %p48
        $region14: #{conv2d_batch_act.2} parent=11 // pred_check_branch
          %145 = sbr.rel (%p143) target = $region16
        $region15: #{conv2d_batch_act.2} parent=11 // pred_region
          %p146 = scmp.lt.s32.totalorder %s20, 0
          %s147 = scalar_select %p146, %s20, 0
          %s148 = smul.addr %s147, 4
          %s149 = scalar_lea.vmem %s0, %s148
        $region16: #{conv2d_batch_act.2} parent=11 // pred_fallthru
          _
      $region12: #{conv2d_batch_act.2} parent=5 // pred_fallthru
        _
      %p150 = scmp.lt.s32.totalorder %s10, 4
      // Predicated region
      $region17: #{conv2d_batch_act.2} parent=5 // pred_check
        %p151 = pneg %p150
      $region18: #{conv2d_batch_act.2} parent=5 // pred_check_branch
        %153 = sbr.rel (%p151) target = $region20
      $region19: #{conv2d_batch_act.2} parent=5 // pred_region
        // Predicated region
        $region21: #{conv2d_batch_act.2} parent=19 // pred_check
          %p154 = pneg %p70
        $region22: #{conv2d_batch_act.2} parent=19 // pred_check_branch
          %156 = sbr.rel (%p154) target = $region24
        $region23: #{conv2d_batch_act.2} parent=19 // pred_region
          %s157 = sand.u32 %s60, 1
          %s158 = sand.u32 %s60, 1
          %s159 = smul.addr %s158, 20
          %s160 = scalar_lea.vmem [#allocation3], %s159
          %s161 = smul.u32 5, %s18
          %s162 = smul.addr %s161, 4
          %s163 = sadd.s32 %s17, %s162
          %s164 = smul.addr %s163, 4
          %s165 = scalar_lea.vmem %s1, %s164
          // Predicated region
          $region25: #{conv2d_batch_act.2} parent=23 // pred_check
            _
          $region26: #{conv2d_batch_act.2} parent=23 // pred_check_branch
            %167 = sbr.rel (0) target = $region28
          $region27: #{conv2d_batch_act.2} parent=23 // pred_region
            // Predicated region
            $region29: #{conv2d_batch_act.2} parent=27 // pred_check
              _
            $region30: #{conv2d_batch_act.2} parent=27 // pred_check_branch
              %169 = sbr.rel target = $region32
            $region31: #{conv2d_batch_act.2} parent=27 // pred_region
              // Predicated region
              $region44: #{conv2d_batch_act.2} parent=31 // pred_check
                _
              $region45: #{conv2d_batch_act.2} parent=31 // pred_check_branch
                %193 = sbr.rel (0) target = $region47
              $region46: #{conv2d_batch_act.2} parent=31 // pred_region
                loop: start=0, step=1, limit=1
                $region48: #{conv2d_batch_act.2} parent=46 // loop_pre_header
                  _
                $region49: #{conv2d_batch_act.2} parent=46 // loop_header
                  %s195 = sphi 0, %s199
                  %p196 = scmp.ge.s32.totalorder %s195, 1
                  %s200 = sphi %s165, %s165
                  %s201 = sphi %s160, %s160
                $region50: #{conv2d_batch_act.2} parent=46 // loop_header_branch
                  %198 = sbr.rel (%p196) target = $region54
                $region51: #{conv2d_batch_act.2} parent=46 // loop_body
                  _
                $region52: #{conv2d_batch_act.2} parent=46 // loop_footer
                  %s199 = sadd.s32 1, %s195
                $region53: #{conv2d_batch_act.2} parent=46 // loop_footer_branch
                  %194 = sbr.rel target = $region49
                $region54: #{conv2d_batch_act.2} parent=46 // loop_exit
                  _
                %s203 = ssub.s32 16, 1
                loop: start=0, step=1, limit=1
                $region55: #{conv2d_batch_act.2} parent=46 // loop_pre_header
                  _
                $region56: #{conv2d_batch_act.2} parent=46 // loop_header
                  %s205 = sphi 0, %s209
                  %p206 = scmp.ge.s32.totalorder %s205, 1
                  %s210 = sphi %s165, %s165
                  %s211 = sphi %s160, %s160
                $region57: #{conv2d_batch_act.2} parent=46 // loop_header_branch
                  %208 = sbr.rel (%p206) target = $region61
                $region58: #{conv2d_batch_act.2} parent=46 // loop_body
                  %v212 = vld [vmem:[%s210] sm:%s203]
                  %213 = vst [vmem:[%s211] sm:%s203] %v212
                  %v214 = vld [vmem:[%s210 + $0x10] sm:%s203]
                  %215 = vst [vmem:[%s211 + $0x4] sm:%s203] %v214
                  %v216 = vld [vmem:[%s210 + $0x20] sm:%s203]
                  %217 = vst [vmem:[%s211 + $0x8] sm:%s203] %v216
                  %v218 = vld [vmem:[%s210 + $0x30] sm:%s203]
                  %219 = vst [vmem:[%s211 + $0xc] sm:%s203] %v218
                  %v220 = vld [vmem:[%s210 + $0x40] sm:%s203]
                  %221 = vst [vmem:[%s211 + $0x10] sm:%s203] %v220
                $region59: #{conv2d_batch_act.2} parent=46 // loop_footer
                  %s209 = sadd.s32 1, %s205
                $region60: #{conv2d_batch_act.2} parent=46 // loop_footer_branch
                  %204 = sbr.rel target = $region56
                $region61: #{conv2d_batch_act.2} parent=46 // loop_exit
                  _
              $region47: #{conv2d_batch_act.2} parent=31 // pred_fallthru
                _
            $region32: #{conv2d_batch_act.2} parent=27 // pred_fallthru
              _
            // Predicated region
            $region33: #{conv2d_batch_act.2} parent=27 // pred_check
              _
            $region34: #{conv2d_batch_act.2} parent=27 // pred_check_branch
              %171 = sbr.rel (0) target = $region36
            $region35: #{conv2d_batch_act.2} parent=27 // pred_region
              %s173 = ssub.s32 16, 1
              loop: start=0, step=1, limit=1
              $region37: #{conv2d_batch_act.2} parent=35 // loop_pre_header
                _
              $region38: #{conv2d_batch_act.2} parent=35 // loop_header
                %s175 = sphi 0, %s179
                %p176 = scmp.ge.s32.totalorder %s175, 1
                %s180 = sphi %s165, %s165
                %s181 = sphi %s160, %s160
              $region39: #{conv2d_batch_act.2} parent=35 // loop_header_branch
                %178 = sbr.rel (%p176) target = $region43
              $region40: #{conv2d_batch_act.2} parent=35 // loop_body
                %v182 = vld [vmem:[%s180] sm:%s173]
                %183 = vst [vmem:[%s181] sm:%s173] %v182
                %v184 = vld [vmem:[%s180 + $0x10] sm:%s173]
                %185 = vst [vmem:[%s181 + $0x4] sm:%s173] %v184
                %v186 = vld [vmem:[%s180 + $0x20] sm:%s173]
                %187 = vst [vmem:[%s181 + $0x8] sm:%s173] %v186
                %v188 = vld [vmem:[%s180 + $0x30] sm:%s173]
                %189 = vst [vmem:[%s181 + $0xc] sm:%s173] %v188
                %v190 = vld [vmem:[%s180 + $0x40] sm:%s173]
                %191 = vst [vmem:[%s181 + $0x10] sm:%s173] %v190
              $region41: #{conv2d_batch_act.2} parent=35 // loop_footer
                %s179 = sadd.s32 1, %s175
              $region42: #{conv2d_batch_act.2} parent=35 // loop_footer_branch
                %174 = sbr.rel target = $region38
              $region43: #{conv2d_batch_act.2} parent=35 // loop_exit
                _
            $region36: #{conv2d_batch_act.2} parent=27 // pred_fallthru
              _
          $region28: #{conv2d_batch_act.2} parent=23 // pred_fallthru
            _
          %222 = vnop
        $region24: #{conv2d_batch_act.2} parent=19 // pred_fallthru
          _
      $region20: #{conv2d_batch_act.2} parent=5 // pred_fallthru
        _
      %p223 = scmp.le.s32.totalorder 1, %s10
      %p224 = scmp.lt.s32.totalorder %s10, 5
      %p225 = pnand %p223, %p224
      %p226 = pneg %p225
      // Predicated region
      $region62: #{conv2d_batch_act.2} parent=5 // pred_check
        _
      $region63: #{conv2d_batch_act.2} parent=5 // pred_check_branch
        %228 = sbr.rel (%p225) target = $region65
      $region64: #{conv2d_batch_act.2} parent=5 // pred_region
        %s229 = ssub.s32 %s10, 1
        %s230 = sand.u32 %s63, 1
        %s231 = sand.u32 %s63, 1
        %s232 = smul.addr %s231, 20
        %s233 = scalar_lea.vmem [#allocation3], %s232
        // Predicated region
        $region66: #{conv2d_batch_act.2} parent=64 // pred_check
          %p234 = pneg %p76
        $region67: #{conv2d_batch_act.2} parent=64 // pred_check_branch
          %236 = sbr.rel (%p234) target = $region69
        $region68: #{conv2d_batch_act.2} parent=64 // pred_region
          _
        $region69: #{conv2d_batch_act.2} parent=64 // pred_fallthru
          _
        %p237 = scmp.lt.s32.totalorder %s20, 0
        %s238 = scalar_select %p237, %s20, 0
        %s239 = smul.addr %s238, 4
        %s240 = scalar_lea.vmem %s0, %s239
        %p241 = pneg %p48
        %p242 = pneg %p45
        %s243 = sand.u32 %s63, 1
        %s244 = sand.u32 %s63, 1
        %s245 = smul.addr %s244, 20
        %s246 = scalar_lea.vmem [#allocation3], %s245
        %p247 = pneg %p76
        %p248 = pneg %p73
        %p249 = pneg %p102
        %p250 = pneg %p99
        %p251 = scmp.lt.s32.totalorder %s19, 3
        %s252 = scalar_select %p251, %s19, 3
        %s253 = smul.addr %s252, 4
        %s254 = scalar_lea.vmem %s2, %s253
        %p255 = pneg %p128
        %p256 = pneg %p125
        %p257 = scmp.lt.s32.totalorder %s19, 3
        %s258 = scalar_select %p257, %s19, 3
        %s259 = smul.addr %s258, 8
        %s260 = scalar_lea.vmem %s3, %s259
        %p261 = scmp.lt.s32.totalorder %s20, 0
        %s262 = scalar_select %p261, %s20, 0
        %s263 = smul.addr %s262, 4
        %s264 = scalar_lea.vmem %s0, %s263
        %s265 = smul.u32 5, %s20
        %p266 = scmp.lt.s32.totalorder %s19, 3
        %s267 = scalar_select %p266, %s19, 3
        %s268 = smul.addr %s267, 4
        %s269 = scalar_lea.vmem %s2, %s268
        %p270 = scmp.lt.s32.totalorder %s19, 3
        %s271 = scalar_select %p270, %s19, 3
        %s272 = smul.addr %s271, 8
        %s273 = scalar_lea.vmem %s3, %s272
        %p275 = scmp.eq.s32.totalorder %s20, 0
        // Predicated region
        $region70: #{conv2d_batch_act.2} parent=64 // pred_check
          %p276 = pneg %p275
        $region71: #{conv2d_batch_act.2} parent=64 // pred_check_branch
          %278 = sbr.rel (%p276) target = $region73
        $region72: #{conv2d_batch_act.2} parent=64 // pred_region
          %279 = vst [vmem:[#allocation2] sm:$0xff] 0.0
        $region73: #{conv2d_batch_act.2} parent=64 // pred_fallthru
          _
        %v280 = vld [vmem:[#allocation2] sm:$0xff]
        %v281 = vld [vmem:[%s264] sm:$0xf]
        %v282 = vld [vmem:[%s233] sm:$0xf]
        %v283 = vld [vmem:[%s233 + $0x4] sm:$0xf]
        %v284 = vld [vmem:[%s233 + $0x8] sm:$0xf]
        %v285 = vld [vmem:[%s233 + $0xc] sm:$0xf]
        %v286 = vld [vmem:[%s233 + $0x10] sm:$0x3]
        %v292 = vunpack.c.l.b16 %v282
        %v293 = vunpack.c.l.b16 %v283
        %v294 = vunpack.c.l.b16 %v284
        %v295 = vunpack.c.l.b16 %v285
        %v296 = vunpack.c.l.b16 %v286
        %v297 = vpack.c.b16 %v293, %v292
        %v298 = vpack.c.b16 %v295, %v294
        %v299 = vpack.c.b16 %v296, %v296
        %vm302 = vcmask 293888
        %v304 = vsel %vm302, %v281, 0
        %vm306 = vcmask 1041408
        %v308 = vsel %vm306, %v299, 0
        %310 = vmatpush.bf16.msra.mxu0 0
        %311 = vmatpush.bf16.msra.mxu0 0
        %312 = vmatpush.bf16.msra.mxu0 0
        %313 = vmatpush.bf16.msra.mxu0 0
        %314 = vmatpush.bf16.msra.mxu0 0
        %315 = vmatpush.bf16.msra.mxu0 %v308
        %316 = vmatpush.bf16.msra.mxu0 %v298
        %317 = vmatpush.bf16.msra.mxu0 %v297
        %318 = vmatmul.bf16.gmra.mxu0 %v304
        %v319 = vpop.f32.mrf.mxu0
        %v320 = vadd.f32 0.0, %v319
        %v321 = vpop.f32.mrf.mxu0
        %322 = vdwg.mxu0
        %v323 = vadd.f32 %v280, %v320
        %324 = vst [vmem:[#allocation2] sm:$0xff] %v323
        // Predicated region
        $region74: #{conv2d_batch_act.2} parent=64 // pred_check
          %p325 = pneg %p275
        $region75: #{conv2d_batch_act.2} parent=64 // pred_check_branch
          %327 = sbr.rel (%p325) target = $region77
        $region76: #{conv2d_batch_act.2} parent=64 // pred_region
          %v328 = vld [vmem:[#allocation2] sm:$0xff]
          %v329 = vpack.c.bf16 %v328, %v328
          %330 = vst [vmem:[%s269] sm:$0xf] %v329
          %331 = vadd.xlane.f32.xlu0 %v328
          %v332 = vpop.xlane.xlu0 %331
          %v333 = vmul.f32 %v328, %v328
          %334 = vadd.xlane.f32.xlu0 %v333
          %v335 = vpop.xlane.xlu0 %334
          %vm336 = vcmask 7168
          %v337 = vsel %vm336, %v332, %v335
          %vm338 = vcmask 15360
          %339 = vst.msk [vmem:[%s273] sm:$0xff] %vm338, %v337
        $region77: #{conv2d_batch_act.2} parent=64 // pred_fallthru
          _
        %p340 = scmp.lt.s32.totalorder %s19, 3
        %s341 = scalar_select %p340, %s19, 3
        %s342 = smul.addr %s341, 4
        %s343 = scalar_lea.vmem %s2, %s342
        %p344 = scmp.lt.s32.totalorder %s19, 3
        %s345 = scalar_select %p344, %s19, 3
        %s346 = smul.addr %s345, 8
        %s347 = scalar_lea.vmem %s3, %s346
        // Predicated region
        $region78: #{conv2d_batch_act.2} parent=64 // pred_check
          %p348 = pneg %p99
        $region79: #{conv2d_batch_act.2} parent=64 // pred_check_branch
          %350 = sbr.rel (%p348) target = $region81
        $region80: #{conv2d_batch_act.2} parent=64 // pred_region
          _
        $region81: #{conv2d_batch_act.2} parent=64 // pred_fallthru
          _
        // Predicated region
        $region82: #{conv2d_batch_act.2} parent=64 // pred_check
          %p351 = pneg %p125
        $region83: #{conv2d_batch_act.2} parent=64 // pred_check_branch
          %353 = sbr.rel (%p351) target = $region85
        $region84: #{conv2d_batch_act.2} parent=64 // pred_region
          _
        $region85: #{conv2d_batch_act.2} parent=64 // pred_fallthru
          _
      $region65: #{conv2d_batch_act.2} parent=5 // pred_fallthru
        _
      %p354 = scmp.le.s32.totalorder 2, %s10
      // Predicated region
      $region86: #{conv2d_batch_act.2} parent=5 // pred_check
        %p355 = pneg %p354
      $region87: #{conv2d_batch_act.2} parent=5 // pred_check_branch
        %357 = sbr.rel (%p355) target = $region89
      $region88: #{conv2d_batch_act.2} parent=5 // pred_region
        %s358 = ssub.s32 %s10, 2
        // Predicated region
        $region90: #{conv2d_batch_act.2} parent=88 // pred_check
          %p359 = pneg %p105
        $region91: #{conv2d_batch_act.2} parent=88 // pred_check_branch
          %361 = sbr.rel (%p359) target = $region93
        $region92: #{conv2d_batch_act.2} parent=88 // pred_region
          %p362 = scmp.lt.s32.totalorder %s21, 3
          %s363 = scalar_select %p362, %s21, 3
          %s364 = smul.addr %s363, 4
          %s365 = scalar_lea.vmem %s2, %s364
        $region93: #{conv2d_batch_act.2} parent=88 // pred_fallthru
          _
        // Predicated region
        $region94: #{conv2d_batch_act.2} parent=88 // pred_check
          %p366 = pneg %p131
        $region95: #{conv2d_batch_act.2} parent=88 // pred_check_branch
          %368 = sbr.rel (%p366) target = $region97
        $region96: #{conv2d_batch_act.2} parent=88 // pred_region
          %p369 = scmp.lt.s32.totalorder %s21, 3
          %s370 = scalar_select %p369, %s21, 3
          %s371 = smul.addr %s370, 8
          %s372 = scalar_lea.vmem %s3, %s371
        $region97: #{conv2d_batch_act.2} parent=88 // pred_fallthru
          _
      $region89: #{conv2d_batch_act.2} parent=5 // pred_fallthru
        _
    $region6: #{conv2d_batch_act.2} parent=1 // loop_footer
      %s14 = sadd.s32 1, %s10
    $region7: #{conv2d_batch_act.2} parent=1 // loop_footer_branch
      %9 = sbr.rel target = $region3
    $region8: #{conv2d_batch_act.2} parent=1 // loop_exit
      _

// kernel: conv2d_batch_act.3
$region0: #{conv2d_batch_act.3}
  #allocation0 [shape = 'u32[]', space=smem, size = 0x4, offset = 0x4, fixed_abs, tag = 'smem constant byte address 0x4 - core index']
  #allocation1 [shape = 'u32[72,128]{1,0:T(1,128)}', space=vmem, size = 0x9000, scoped, tag = 'internal scratch']
  %s0 = inlined_call_operand.vmem [shape: bf16[8,512], index: 0, kind: input, shape index: {}]
  %s1 = inlined_call_operand.vmem [shape: f32[8,1], index: 1, kind: input, shape index: {}]
  %s2 = inlined_call_operand.vmem [shape: f32[8,1], index: 2, kind: input, shape index: {}]
  %s3 = inlined_call_operand.vmem [shape: f32[2,8,256], index: 3, kind: output, shape index: {}]
  %s4 = sld [smem:[#allocation0]]
  $region45: #{conv2d_batch_act.3} parent=0
    _
  %s6 = ssub.s32 1, %s4
  %s7 = scalar_select 0, %s6, %s4
  loop: start=0, step=1, limit=6
  $region2: #{conv2d_batch_act.3} parent=0 // loop_pre_header
    _
  $region3: #{conv2d_batch_act.3} parent=0 // loop_header
    %s9 = sphi 0, %s13
    %p10 = scmp.ge.s32.totalorder %s9, 6
    %s16 = sphi 0, %s28
    %s17 = sphi 0, %s24
    %s18 = sphi 0, %s16
    %s19 = sphi 0, %s17
    %s20 = sphi 0, %s18
    %s21 = sphi 0, %s19
    %s35 = sphi 0, %s37
    %s38 = sphi 0, %s35
    %s39 = sphi 0, %s38
    %s55 = sphi 0, %s39
    %s59 = sphi 0, %s59
    %s61 = sphi 0, %s59
    %s62 = sphi 0, %s61
    %s76 = sphi 0, %s62
    %s80 = sphi 0, %s80
    %s82 = sphi 0, %s80
    %s83 = sphi 0, %s82
    %s97 = sphi 0, %s83
    %s105 = sphi 0, %s107
    %s108 = sphi 0, %s105
    %s109 = sphi 0, %s108
    %s125 = sphi 0, %s109
  $region4: #{conv2d_batch_act.3} parent=0 // loop_header_branch
    %12 = sbr.rel (%p10) target = $region8
  $region5: #{conv2d_batch_act.3} parent=0 // loop_body
    %s14 = ssub.s32 %s9, 1
    %s15 = ssub.s32 %s9, 2
    %s22 = sadd.s32 1, %s17
    %p23 = scmp.ge.s32.totalorder %s22, 2
    %s24 = scalar_select %p23, 0, %s22
    %s25 = sadd.s32 1, %s16
    %s26 = scalar_select %p23, %s25, %s16
    %p27 = scmp.ge.s32.totalorder %s26, 2
    %s28 = scalar_select %p27, 0, %s26
    %s29 = smul.u32 %s16, 2
    %s30 = sadd.s32 %s29, %s17
    %s31 = smul.u32 %s28, 2
    %s32 = sadd.s32 %s31, %s24
    %s33 = ssub.s32 %s30, %s32
    %p34 = scmp.eq.s32.totalorder %s33, 0
    %s36 = sadd.s32 %s35, 1
    %s37 = scalar_select %p34, %s35, %s36
    %p40 = pneg %p34
    %p41 = scmp.eq.s32.totalorder %s9, 3
    %p42 = por %p40, %p41
    %p43 = scmp.ne.s32.totalorder %s35, %s38
    %p44 = scmp.eq.s32.totalorder %s9, 0
    %p45 = por %p43, %p44
    %p46 = scmp.ne.s32.totalorder %s35, %s38
    %p47 = scmp.eq.s32.totalorder %s14, 3
    %p48 = por %p46, %p47
    %p49 = scmp.ne.s32.totalorder %s38, %s39
    %p50 = scmp.eq.s32.totalorder %s14, 0
    %p51 = por %p49, %p50
    %p52 = scmp.ne.s32.totalorder %s38, %s39
    %p53 = scmp.eq.s32.totalorder %s15, 3
    %p54 = por %p52, %p53
    %p56 = scmp.ne.s32.totalorder %s39, %s55
    %p57 = scmp.eq.s32.totalorder %s15, 0
    %p58 = por %p56, %p57
    %s60 = sadd.s32 %s59, 1
    %p63 = scmp.eq.s32.totalorder %s9, 3
    %p64 = scmp.ne.s32.totalorder %s59, %s61
    %p65 = scmp.eq.s32.totalorder %s9, 0
    %p66 = por %p64, %p65
    %p67 = scmp.ne.s32.totalorder %s59, %s61
    %p68 = scmp.eq.s32.totalorder %s14, 3
    %p69 = por %p67, %p68
    %p70 = scmp.ne.s32.totalorder %s61, %s62
    %p71 = scmp.eq.s32.totalorder %s14, 0
    %p72 = por %p70, %p71
    %p73 = scmp.ne.s32.totalorder %s61, %s62
    %p74 = scmp.eq.s32.totalorder %s15, 3
    %p75 = por %p73, %p74
    %p77 = scmp.ne.s32.totalorder %s62, %s76
    %p78 = scmp.eq.s32.totalorder %s15, 0
    %p79 = por %p77, %p78
    %s81 = sadd.s32 %s80, 1
    %p84 = scmp.eq.s32.totalorder %s9, 3
    %p85 = scmp.ne.s32.totalorder %s80, %s82
    %p86 = scmp.eq.s32.totalorder %s9, 0
    %p87 = por %p85, %p86
    %p88 = scmp.ne.s32.totalorder %s80, %s82
    %p89 = scmp.eq.s32.totalorder %s14, 3
    %p90 = por %p88, %p89
    %p91 = scmp.ne.s32.totalorder %s82, %s83
    %p92 = scmp.eq.s32.totalorder %s14, 0
    %p93 = por %p91, %p92
    %p94 = scmp.ne.s32.totalorder %s82, %s83
    %p95 = scmp.eq.s32.totalorder %s15, 3
    %p96 = por %p94, %p95
    %p98 = scmp.ne.s32.totalorder %s83, %s97
    %p99 = scmp.eq.s32.totalorder %s15, 0
    %p100 = por %p98, %p99
    %s101 = ssub.s32 %s16, %s28
    %s102 = ssub.s32 %s17, %s24
    %s103 = sor.u32 %s101, %s102
    %p104 = scmp.eq.s32.totalorder %s103, 0
    %s106 = sadd.s32 %s105, 1
    %s107 = scalar_select %p104, %s105, %s106
    %p110 = pneg %p104
    %p111 = scmp.eq.s32.totalorder %s9, 3
    %p112 = por %p110, %p111
    %p113 = scmp.ne.s32.totalorder %s105, %s108
    %p114 = scmp.eq.s32.totalorder %s9, 0
    %p115 = por %p113, %p114
    %p116 = scmp.ne.s32.totalorder %s105, %s108
    %p117 = scmp.eq.s32.totalorder %s14, 3
    %p118 = por %p116, %p117
    %p119 = scmp.ne.s32.totalorder %s108, %s109
    %p120 = scmp.eq.s32.totalorder %s14, 0
    %p121 = por %p119, %p120
    %p122 = scmp.ne.s32.totalorder %s108, %s109
    %p123 = scmp.eq.s32.totalorder %s15, 3
    %p124 = por %p122, %p123
    %p126 = scmp.ne.s32.totalorder %s109, %s125
    %p127 = scmp.eq.s32.totalorder %s15, 0
    %p128 = por %p126, %p127
    %p129 = scmp.le.s32.totalorder 1, %s9
    %p130 = scmp.lt.s32.totalorder %s9, 5
    %p131 = pnand %p129, %p130
    %p132 = pneg %p131
    // Predicated region
    $region9: #{conv2d_batch_act.3} parent=5 // pred_check
      _
    $region10: #{conv2d_batch_act.3} parent=5 // pred_check_branch
      %134 = sbr.rel (%p131) target = $region12
    $region11: #{conv2d_batch_act.3} parent=5 // pred_region
      %s135 = ssub.s32 %s9, 1
      // Predicated region
      $region13: #{conv2d_batch_act.3} parent=11 // pred_check
        %p136 = pneg %p72
      $region14: #{conv2d_batch_act.3} parent=11 // pred_check_branch
        %138 = sbr.rel (%p136) target = $region16
      $region15: #{conv2d_batch_act.3} parent=11 // pred_region
        _
      $region16: #{conv2d_batch_act.3} parent=11 // pred_fallthru
        _
      // Predicated region
      $region17: #{conv2d_batch_act.3} parent=11 // pred_check
        %p139 = pneg %p93
      $region18: #{conv2d_batch_act.3} parent=11 // pred_check_branch
        %141 = sbr.rel (%p139) target = $region20
      $region19: #{conv2d_batch_act.3} parent=11 // pred_region
        _
      $region20: #{conv2d_batch_act.3} parent=11 // pred_fallthru
        _
    $region12: #{conv2d_batch_act.3} parent=5 // pred_fallthru
      _
    %p142 = scmp.lt.s32.totalorder %s9, 4
    // Predicated region
    $region21: #{conv2d_batch_act.3} parent=5 // pred_check
      %p143 = pneg %p142
    $region22: #{conv2d_batch_act.3} parent=5 // pred_check_branch
      %145 = sbr.rel (%p143) target = $region24
    $region23: #{conv2d_batch_act.3} parent=5 // pred_region
      // Predicated region
      $region25: #{conv2d_batch_act.3} parent=23 // pred_check
        %p146 = pneg %p45
      $region26: #{conv2d_batch_act.3} parent=23 // pred_check_branch
        %148 = sbr.rel (%p146) target = $region28
      $region27: #{conv2d_batch_act.3} parent=23 // pred_region
        %s149 = smul.u32 %s16, 2
        %s150 = sadd.s32 %s149, %s17
        %p151 = scmp.lt.s32.totalorder %s150, 3
        %s152 = scalar_select %p151, %s150, 3
        %s153 = smul.addr %s152, 4
        %s154 = scalar_lea.vmem %s0, %s153
        %s155 = smul.u32 %s16, 2
        %s156 = sadd.s32 %s155, %s17
      $region28: #{conv2d_batch_act.3} parent=23 // pred_fallthru
        _
    $region24: #{conv2d_batch_act.3} parent=5 // pred_fallthru
      _
    %p157 = scmp.le.s32.totalorder 1, %s9
    %p158 = scmp.lt.s32.totalorder %s9, 5
    %p159 = pnand %p157, %p158
    %p160 = pneg %p159
    // Predicated region
    $region29: #{conv2d_batch_act.3} parent=5 // pred_check
      _
    $region30: #{conv2d_batch_act.3} parent=5 // pred_check_branch
      %162 = sbr.rel (%p159) target = $region32
    $region31: #{conv2d_batch_act.3} parent=5 // pred_region
      %s163 = ssub.s32 %s9, 1
      %s164 = smul.u32 %s18, 2
      %s165 = sadd.s32 %s164, %s19
      %p166 = scmp.lt.s32.totalorder %s165, 3
      %s167 = scalar_select %p166, %s165, 3
      %s168 = smul.addr %s167, 4
      %s169 = scalar_lea.vmem %s0, %s168
      %p170 = pneg %p51
      %p171 = pneg %p48
      %p172 = pneg %p72
      %p173 = pneg %p69
      %p174 = pneg %p93
      %p175 = pneg %p90
      %p176 = pneg %p121
      %p177 = pneg %p118
      %p178 = scmp.lt.s32.totalorder %s18, 1
      %s179 = scalar_select %p178, %s18, 1
      %p180 = scmp.lt.s32.totalorder %s19, 1
      %s181 = scalar_select %p180, %s19, 1
      %s182 = smul.addr %s179, 2
      %s183 = sadd.s32 %s181, %s182
      %s184 = smul.addr %s183, 8
      %s185 = scalar_lea.vmem %s3, %s184
      %s186 = smul.u32 %s18, 2
      %s187 = sadd.s32 %s186, %s19
      %p188 = scmp.lt.s32.totalorder %s187, 3
      %s189 = scalar_select %p188, %s187, 3
      %s190 = smul.addr %s189, 4
      %s191 = scalar_lea.vmem %s0, %s190
      %s192 = smul.u32 %s18, 2
      %s193 = sadd.s32 %s192, %s19
      %p194 = scmp.lt.s32.totalorder %s18, 1
      %s195 = scalar_select %p194, %s18, 1
      %p196 = scmp.lt.s32.totalorder %s19, 1
      %s197 = scalar_select %p196, %s19, 1
      %s198 = smul.addr %s195, 2
      %s199 = sadd.s32 %s197, %s198
      %s200 = smul.addr %s199, 8
      %s201 = scalar_lea.vmem %s3, %s200
      %v202 = vld [vmem:[%s191] sm:$0xf]
      %v203 = vunpack.c.l.bf16 %v202
      %v204 = vld [vmem:[%s1] sm:$0xff]
      %206 = vset.pattern.permute.xlu0 0
      %207 = vperm.xlu0 %206, %v204
      %v208 = vpop.permute.xlu0 %207
      %v210 = vmul.f32 %v203, %v208
      %v211 = vld [vmem:[%s2] sm:$0xff]
      %213 = vset.pattern.permute.xlu0 0
      %214 = vperm.xlu0 %213, %v211
      %v215 = vpop.permute.xlu0 %214
      %v217 = vadd.f32 %v210, %v215
      %v218 = vmax.f32 %v217, 0.0
      %219 = vst [vmem:[%s201] sm:$0xff] %v218
      %p220 = scmp.lt.s32.totalorder %s18, 1
      %s221 = scalar_select %p220, %s18, 1
      %p222 = scmp.lt.s32.totalorder %s19, 1
      %s223 = scalar_select %p222, %s19, 1
      %s224 = smul.addr %s221, 2
      %s225 = sadd.s32 %s223, %s224
      %s226 = smul.addr %s225, 8
      %s227 = scalar_lea.vmem %s3, %s226
      // Predicated region
      $region33: #{conv2d_batch_act.3} parent=31 // pred_check
        %p228 = pneg %p118
      $region34: #{conv2d_batch_act.3} parent=31 // pred_check_branch
        %230 = sbr.rel (%p228) target = $region36
      $region35: #{conv2d_batch_act.3} parent=31 // pred_region
        _
      $region36: #{conv2d_batch_act.3} parent=31 // pred_fallthru
        _
    $region32: #{conv2d_batch_act.3} parent=5 // pred_fallthru
      _
    %p231 = scmp.le.s32.totalorder 2, %s9
    // Predicated region
    $region37: #{conv2d_batch_act.3} parent=5 // pred_check
      %p232 = pneg %p231
    $region38: #{conv2d_batch_act.3} parent=5 // pred_check_branch
      %234 = sbr.rel (%p232) target = $region40
    $region39: #{conv2d_batch_act.3} parent=5 // pred_region
      %s235 = ssub.s32 %s9, 2
      // Predicated region
      $region41: #{conv2d_batch_act.3} parent=39 // pred_check
        %p236 = pneg %p124
      $region42: #{conv2d_batch_act.3} parent=39 // pred_check_branch
        %238 = sbr.rel (%p236) target = $region44
      $region43: #{conv2d_batch_act.3} parent=39 // pred_region
        %p239 = scmp.lt.s32.totalorder %s20, 1
        %s240 = scalar_select %p239, %s20, 1
        %p241 = scmp.lt.s32.totalorder %s21, 1
        %s242 = scalar_select %p241, %s21, 1
        %s243 = smul.addr %s240, 2
        %s244 = sadd.s32 %s242, %s243
        %s245 = smul.addr %s244, 8
        %s246 = scalar_lea.vmem %s3, %s245
      $region44: #{conv2d_batch_act.3} parent=39 // pred_fallthru
        _
    $region40: #{conv2d_batch_act.3} parent=5 // pred_fallthru
      _
  $region6: #{conv2d_batch_act.3} parent=0 // loop_footer
    %s13 = sadd.s32 1, %s9
  $region7: #{conv2d_batch_act.3} parent=0 // loop_footer_branch
    %8 = sbr.rel target = $region3
  $region8: #{conv2d_batch_act.3} parent=0 // loop_exit
    _

</llo_original>
